<compile_context>
chip_gen: v6e
topology: v6e:2x2x1
jax: 0.10.0
libtpu: 0.0.40
codegen_flags: <defaults>
</compile_context>

<pallas_src>
import functools

import jax
import jax.numpy as jnp
from jax import lax
from jax.experimental import pallas as pl
from jax.experimental.pallas import tpu as pltpu


def _round_up(n, m):
    return ((n + m - 1) // m) * m


def _mlp_kernel(*refs, num_hidden, mxu_dtype):
    """refs = (x_ref, w1, b1, ..., wN, bN, w_out_row, b_out, o_ref).

    Fused forward for one batch tile: all hidden Linear+Tanh layers on the MXU
    (f32 accumulation), then the 1-unit head as a hidden-axis contraction that
    produces a lane-dense (1, tb) output row.
    """
    x_ref = refs[0]
    o_ref = refs[-1]
    layer_refs = refs[1:-1]

    h = x_ref[...]
    for i in range(num_hidden):
        w = layer_refs[2 * i][...]          # (in, out), possibly already bf16
        b = layer_refs[2 * i + 1][...]      # (1, out), f32
        lhs = h if mxu_dtype is None else h.astype(mxu_dtype)
        h = jnp.tanh(
            jnp.dot(lhs, w, preferred_element_type=jnp.float32) + b
        )

    w_out_row = layer_refs[2 * num_hidden][...]   # (1, H_last)
    b_out = layer_refs[2 * num_hidden + 1][...]   # (1, 1), f32
    rhs = h if mxu_dtype is None else h.astype(mxu_dtype)
    # (1, H_last) x (tb, H_last) contracted on the hidden axis -> (1, tb).
    # Output batch index lives in the lane dimension => unmasked lane-dense vst.
    out = lax.dot_general(
        w_out_row, rhs,
        dimension_numbers=(((1,), (1,)), ((), ())),
        preferred_element_type=jnp.float32,
    ) + b_out
    o_ref[...] = out.astype(o_ref.dtype)


def mlp_forward(x, params, *, batch_tile=None, mxu_dtype=None):
    """x: (B, input_dim) f32.

    params: (w1, b1, ..., wk, bk, w_out, b_out) with weights stored as
    (in_features, out_features), biases as (1, out_features); w_out is
    (H_last, 1), b_out is (1, 1).

    mxu_dtype: optional dtype (e.g. jnp.bfloat16) for the matmul operands;
    accumulation, bias adds and tanh stay in f32.
    """
    *hidden_params, w_out, b_out = params
    num_hidden = len(hidden_params) // 2
    B, D = x.shape

    # --- choose batch tile (multiple of 8 sublanes) -------------------------
    if batch_tile is None:
        tb = min(512, _round_up(B, 8))
        # keep the double-buffered x block comfortably small in VMEM
        tb_cap = max(8, ((8 << 20) // (8 * D)) // 8 * 8)
        tb = max(8, min(tb, tb_cap))
    else:
        tb = _round_up(max(int(batch_tile), 1), 8)

    Bp = _round_up(B, tb)
    if Bp != tb and tb % 128 != 0:
        # lane-dense (1, tb) output block needs a 128-multiple tile when the
        # grid has more than one step
        tb = _round_up(tb, 128)
        Bp = _round_up(B, tb)

    if Bp != B:
        x = jnp.pad(x, ((0, Bp - B), (0, 0)))

    # Final layer weight as a (1, H_last) row for the lane-dense contraction.
    w_out_row = w_out.reshape(1, -1)

    layer_arrays = list(hidden_params) + [w_out_row, b_out]
    if mxu_dtype is not None:
        # Cast weight matrices once in the wrapper (halves their DMA/VMEM
        # footprint); biases stay f32 so the adds stay in f32.
        for i in range(num_hidden + 1):
            layer_arrays[2 * i] = layer_arrays[2 * i].astype(mxu_dtype)

    ins = [x] + layer_arrays

    full = lambda i: (0, 0)  # params: same (whole-array) block every grid step
    in_specs = [pl.BlockSpec((tb, D), lambda i: (i, 0))]
    for p in ins[1:]:
        in_specs.append(pl.BlockSpec(p.shape, full))

    # --- cost estimate ------------------------------------------------------
    dims = [D] + [hidden_params[2 * i].shape[1] for i in range(num_hidden)] + [1]
    flops = 2 * Bp * sum(dims[i] * dims[i + 1] for i in range(len(dims) - 1))
    transcendentals = Bp * sum(dims[1:-1])
    param_bytes = sum(int(p.size) * p.dtype.itemsize for p in ins[1:])
    bytes_accessed = 4 * Bp * D + param_bytes + 4 * Bp

    # --- VMEM budget: double-buffered x + out blocks, resident params -------
    vmem = 2 * (tb * D * 4) + 2 * (tb * 4) + 2 * param_bytes + (4 << 20)
    vmem = int(min(max(vmem, 16 << 20), 48 << 20))  # stay within v7x's 64 MiB

    kernel = functools.partial(
        _mlp_kernel, num_hidden=num_hidden, mxu_dtype=mxu_dtype
    )

    out = pl.pallas_call(
        kernel,
        out_shape=jax.ShapeDtypeStruct((1, Bp), jnp.float32),
        grid_spec=pltpu.PrefetchScalarGridSpec(
            num_scalar_prefetch=0,
            grid=(Bp // tb,),
            in_specs=in_specs,
            out_specs=pl.BlockSpec((1, tb), lambda i: (0, i)),
        ),
        compiler_params=pltpu.CompilerParams(
            dimension_semantics=("parallel",),
            vmem_limit_bytes=vmem,
        ),
        cost_estimate=pl.CostEstimate(
            flops=int(flops),
            transcendentals=int(transcendentals),
            bytes_accessed=int(bytes_accessed),
        ),
    )(*ins)

    return out[0, :B].reshape(B, 1)


def init_mlp_params(key, input_dim, hidden_units):
    """nn.Linear-style init (uniform +/- 1/sqrt(fan_in)).
    Weights are stored as (in_features, out_features)."""
    dims = [input_dim] + list(hidden_units) + [1]
    params = []
    for i in range(len(dims) - 1):
        fan_in, fan_out = dims[i], dims[i + 1]
        key, kw, kb = jax.random.split(key, 3)
        bound = 1.0 / jnp.sqrt(jnp.float32(fan_in))
        w = jax.random.uniform(kw, (fan_in, fan_out), jnp.float32, -bound, bound)
        b = jax.random.uniform(kb, (1, fan_out), jnp.float32, -bound, bound)
        params.extend([w, b])
    return tuple(params)


def mlp_reference(x, params):
    *hidden, w_out, b_out = params
    h = x
    for i in range(0, len(hidden), 2):
        h = jnp.tanh(h @ hidden[i] + hidden[i + 1])
    return h @ w_out + b_out


if __name__ == "__main__":
    key = jax.random.PRNGKey(0)
    input_dim = 16
    hidden_units = [32, 32]

    kx1, kx2, kp = jax.random.split(key, 3)
    params = init_mlp_params(kp, input_dim, hidden_units)

    # Case 1: tiny batch (single grid step, tile padded to 8 sublanes).
    x1 = jax.random.normal(kx1, (8, input_dim), jnp.float32)
    out1 = jax.block_until_ready(mlp_forward(x1, params))
    ref1 = mlp_reference(x1, params)
    assert out1.shape == (8, 1)
    assert jnp.allclose(out1, ref1, atol=1e-5, rtol=1e-5)

    # Case 2: non-divisible batch, multi-step pipelined grid (pads 200 -> 256).
    x2 = jax.random.normal(kx2, (200, input_dim), jnp.float32)
    out2 = jax.block_until_ready(mlp_forward(x2, params, batch_tile=128))
    ref2 = mlp_reference(x2, params)
    assert out2.shape == (200, 1)
    assert jnp.allclose(out2, ref2, atol=1e-5, rtol=1e-5)

    # Case 3: bf16 MXU operands (v6e/v7x fast path), f32 accumulation.
    out3 = jax.block_until_ready(
        mlp_forward(x2, params, batch_tile=128, mxu_dtype=jnp.bfloat16)
    )
    assert out3.shape == (200, 1)
    assert jnp.allclose(out3, ref2, atol=5e-2, rtol=5e-2)

    # Case 4: default auto-tiling on a larger batch.
    x4 = jax.random.normal(kx1, (1000, input_dim), jnp.float32)
    out4 = jax.block_until_ready(mlp_forward(x4, params))
    ref4 = mlp_reference(x4, params)
    assert out4.shape == (1000, 1)
    assert jnp.allclose(out4, ref4, atol=1e-5, rtol=1e-5)

    print("KERNEL_OK")
</pallas_src>

<mosaic_0001>
module attributes {stable_mosaic.version = 11 : i64} {
  func.func @_mlp_kernel(%arg0: i32, %arg1: memref<8x16xf32, #tpu.memory_space<vmem>>, %arg2: memref<16x32xf32, #tpu.memory_space<vmem>>, %arg3: memref<1x32xf32, #tpu.memory_space<vmem>>, %arg4: memref<32x32xf32, #tpu.memory_space<vmem>>, %arg5: memref<1x32xf32, #tpu.memory_space<vmem>>, %arg6: memref<1x32xf32, #tpu.memory_space<vmem>>, %arg7: memref<1x1xf32, #tpu.memory_space<vmem>>, %arg8: memref<1x8xf32, #tpu.memory_space<vmem>>) attributes {dimension_semantics = [#tpu.dimension_semantics<parallel>], iteration_bounds = array<i64: 1>, scalar_prefetch = 0 : i64, scratch_operands = 0 : i64, tpu.core_type = #tpu.core_type<tc>, window_params = [{transform_indices = @transform_0, window_bounds = array<i64: 8, 16>}, {pipeline_mode = #tpu.pipeline_mode<synchronous>, transform_indices = @transform_1, window_bounds = array<i64: 16, 32>}, {pipeline_mode = #tpu.pipeline_mode<synchronous>, transform_indices = @transform_2, window_bounds = array<i64: 1, 32>}, {pipeline_mode = #tpu.pipeline_mode<synchronous>, transform_indices = @transform_3, window_bounds = array<i64: 32, 32>}, {pipeline_mode = #tpu.pipeline_mode<synchronous>, transform_indices = @transform_4, window_bounds = array<i64: 1, 32>}, {pipeline_mode = #tpu.pipeline_mode<synchronous>, transform_indices = @transform_5, window_bounds = array<i64: 1, 32>}, {pipeline_mode = #tpu.pipeline_mode<synchronous>, transform_indices = @transform_6, window_bounds = array<i64: 1, 1>}, {transform_indices = @transform_7, window_bounds = array<i64: 1, 8>}]} {
    %c0 = arith.constant 0 : index
    %c0_0 = arith.constant 0 : index
    %0 = vector.load %arg1[%c0, %c0_0] : memref<8x16xf32, #tpu.memory_space<vmem>>, vector<8x16xf32>
    %c0_1 = arith.constant 0 : index
    %c0_2 = arith.constant 0 : index
    %1 = vector.load %arg2[%c0_1, %c0_2] : memref<16x32xf32, #tpu.memory_space<vmem>>, vector<16x32xf32>
    %c0_3 = arith.constant 0 : index
    %c0_4 = arith.constant 0 : index
    %2 = vector.load %arg3[%c0_3, %c0_4] : memref<1x32xf32, #tpu.memory_space<vmem>>, vector<1x32xf32>
    %cst = arith.constant dense<0.000000e+00> : vector<8x32xf32>
    %3 = tpu.matmul %0, %1, %cst {dimension_numbers = #tpu.dot_dimension_numbers<[1], [0], [0], [1], [0, 0, 1, 1], [], []>} : vector<8x16xf32>, vector<16x32xf32>, vector<8x32xf32> -> vector<8x32xf32>
    %4 = vector.broadcast %2 : vector<1x32xf32> to vector<8x32xf32>
    %5 = arith.addf %3, %4 : vector<8x32xf32>
    %6 = math.tanh %5 : vector<8x32xf32>
    %c0_5 = arith.constant 0 : index
    %c0_6 = arith.constant 0 : index
    %7 = vector.load %arg4[%c0_5, %c0_6] : memref<32x32xf32, #tpu.memory_space<vmem>>, vector<32x32xf32>
    %c0_7 = arith.constant 0 : index
    %c0_8 = arith.constant 0 : index
    %8 = vector.load %arg5[%c0_7, %c0_8] : memref<1x32xf32, #tpu.memory_space<vmem>>, vector<1x32xf32>
    %cst_9 = arith.constant dense<0.000000e+00> : vector<8x32xf32>
    %9 = tpu.matmul %6, %7, %cst_9 {dimension_numbers = #tpu.dot_dimension_numbers<[1], [0], [0], [1], [0, 0, 1, 1], [], []>} : vector<8x32xf32>, vector<32x32xf32>, vector<8x32xf32> -> vector<8x32xf32>
    %10 = vector.broadcast %8 : vector<1x32xf32> to vector<8x32xf32>
    %11 = arith.addf %9, %10 : vector<8x32xf32>
    %12 = math.tanh %11 : vector<8x32xf32>
    %c0_10 = arith.constant 0 : index
    %c0_11 = arith.constant 0 : index
    %13 = vector.load %arg6[%c0_10, %c0_11] : memref<1x32xf32, #tpu.memory_space<vmem>>, vector<1x32xf32>
    %c0_12 = arith.constant 0 : index
    %c0_13 = arith.constant 0 : index
    %14 = vector.load %arg7[%c0_12, %c0_13] : memref<1x1xf32, #tpu.memory_space<vmem>>, vector<1x1xf32>
    %cst_14 = arith.constant dense<0.000000e+00> : vector<1x8xf32>
    %15 = tpu.matmul %13, %12, %cst_14 {dimension_numbers = #tpu.dot_dimension_numbers<[1], [1], [0], [0], [0, 0, 1, 0], [], []>} : vector<1x32xf32>, vector<8x32xf32>, vector<1x8xf32> -> vector<1x8xf32>
    %16 = vector.broadcast %14 : vector<1x1xf32> to vector<1x8xf32>
    %17 = arith.addf %15, %16 : vector<1x8xf32>
    %c0_15 = arith.constant 0 : index
    %c0_16 = arith.constant 0 : index
    %18 = vector.load %arg8[%c0_15, %c0_16] : memref<1x8xf32, #tpu.memory_space<vmem>>, vector<1x8xf32>
    tpu.vector_store %arg8[%c0_15, %c0_16], %17 {strides = array<i32>} : memref<1x8xf32, #tpu.memory_space<vmem>>, vector<1x8xf32>,
    return
  }
  func.func @transform_0(%arg0: i32) -> (i32, i32) {
    %c0_i32 = arith.constant 0 : i32
    %c0_i32_0 = arith.constant 0 : i32
    return %arg0, %c0_i32 : i32, i32
  }
  func.func @transform_1(%arg0: i32) -> (i32, i32) {
    %c0_i32 = arith.constant 0 : i32
    %c0_i32_0 = arith.constant 0 : i32
    %c0_i32_1 = arith.constant 0 : i32
    return %c0_i32, %c0_i32_0 : i32, i32
  }
  func.func @transform_2(%arg0: i32) -> (i32, i32) {
    %c0_i32 = arith.constant 0 : i32
    %c0_i32_0 = arith.constant 0 : i32
    %c0_i32_1 = arith.constant 0 : i32
    return %c0_i32, %c0_i32_0 : i32, i32
  }
  func.func @transform_3(%arg0: i32) -> (i32, i32) {
    %c0_i32 = arith.constant 0 : i32
    %c0_i32_0 = arith.constant 0 : i32
    %c0_i32_1 = arith.constant 0 : i32
    return %c0_i32, %c0_i32_0 : i32, i32
  }
  func.func @transform_4(%arg0: i32) -> (i32, i32) {
    %c0_i32 = arith.constant 0 : i32
    %c0_i32_0 = arith.constant 0 : i32
    %c0_i32_1 = arith.constant 0 : i32
    return %c0_i32, %c0_i32_0 : i32, i32
  }
  func.func @transform_5(%arg0: i32) -> (i32, i32) {
    %c0_i32 = arith.constant 0 : i32
    %c0_i32_0 = arith.constant 0 : i32
    %c0_i32_1 = arith.constant 0 : i32
    return %c0_i32, %c0_i32_0 : i32, i32
  }
  func.func @transform_6(%arg0: i32) -> (i32, i32) {
    %c0_i32 = arith.constant 0 : i32
    %c0_i32_0 = arith.constant 0 : i32
    %c0_i32_1 = arith.constant 0 : i32
    return %c0_i32, %c0_i32_0 : i32, i32
  }
  func.func @transform_7(%arg0: i32) -> (i32, i32) {
    %c0_i32 = arith.constant 0 : i32
    %c0_i32_0 = arith.constant 0 : i32
    return %c0_i32, %arg0 : i32, i32
  }
}

</mosaic_0001>

<llo_original>
// kernel: tpu_custom_call.1
$region0: #{tpu_custom_call.1}
  #allocation0 [shape = 'u32[]', space=smem, size = 0x4, offset = 0x4, fixed_abs, tag = 'smem constant byte address 0x4 - core index']
  #allocation1 [shape = 'u32[144,128]{1,0:T(1,128)}', space=vmem, size = 0x12000, scoped, tag = 'internal scratch']
  #allocation2 [shape = 'f32[1,1]{1,0:T(1,128)S(1)}', space=vmem, size = 0x200, scoped, tag = 'scoped memory for tpu_custom_call.1']
  %s0 = inlined_call_operand.hbm [shape: f32[8,16], index: 0, kind: input, shape index: {}]
  %s1 = inlined_call_operand.hbm [shape: f32[16,32], index: 1, kind: input, shape index: {}]
  %s2 = inlined_call_operand.vmem [shape: f32[1,32], index: 2, kind: input, shape index: {}]
  %s3 = inlined_call_operand.hbm [shape: f32[32,32], index: 3, kind: input, shape index: {}]
  %s4 = inlined_call_operand.vmem [shape: f32[1,32], index: 4, kind: input, shape index: {}]
  %s5 = inlined_call_operand.vmem [shape: f32[1,32], index: 5, kind: input, shape index: {}]
  %s6 = inlined_call_operand.<no memory space> [shape: f32[1,1], index: 6, kind: input, shape index: {}]
  %s7 = inlined_call_operand.hbm [shape: f32[1,8], index: 7, kind: output, shape index: {}]
  %s8 = sld [smem:[#allocation0]]
  $region50: #{tpu_custom_call.1} parent=0
    _
  %s10 = ssub.s32 1, %s8
  %s11 = scalar_select 0, %s10, %s8
  %v12 = vstv %s6
  %13 = vst [vmem:[#allocation2] sm:$0x1] %v12
  $region1: #{tpu_custom_call.1} parent=0
    #allocation3 [shape = 'u8[4096]{0}', space=vmem, size = 0x1000, scoped, tag = 'input window, operand 0, single buffered']
    #allocation4 [shape = 's32[1]{0}', space=sflag, size = 0x4, scoped, tag = 'scoped memory for tpu_custom_call.1']
    #allocation5 [shape = 's32[1]{0}', space=sflag, size = 0x4, scoped, tag = 'scoped memory for tpu_custom_call.1']
    #allocation6 [shape = 'u8[8192]{0}', space=vmem, size = 0x2000, scoped, tag = 'input window, operand 1, single buffered']
    #allocation7 [shape = 's32[1]{0}', space=sflag, size = 0x4, scoped, tag = 'scoped memory for tpu_custom_call.1']
    #allocation8 [shape = 'u8[16384]{0}', space=vmem, size = 0x4000, scoped, tag = 'input window, operand 3, single buffered']
    #allocation9 [shape = 'u8[512]{0}', space=vmem, size = 0x400, scoped, tag = 'output window, operand 0, single buffered']
    %14 = vsyncpa [#allocation4], 0
    %15 = vsyncpa [#allocation7], 0
    %16 = vsyncpa [#allocation5], 0
    // Predicated region
    $region2: #{tpu_custom_call.1} parent=1 // pred_check
      _
    $region3: #{tpu_custom_call.1} parent=1 // pred_check_branch
      %18 = sbr.rel (0) target = $region5
    $region4: #{tpu_custom_call.1} parent=1 // pred_region
      %s20 = ssub.s32 128, 128
      %21 = vsyncadd [#allocation4], %s20
      %s23 = sshll.u32 [#allocation3], 4
      %s24 = int_to_ptr.vmem [resolvable:$true] %s23
      %26 = dma.hbm_to_vmem [thread:$0]  %s0, 128, %s24, [#allocation4]
    $region5: #{tpu_custom_call.1} parent=1 // pred_fallthru
      _
    // Predicated region
    $region6: #{tpu_custom_call.1} parent=1 // pred_check
      _
    $region7: #{tpu_custom_call.1} parent=1 // pred_check_branch
      %28 = sbr.rel (0) target = $region9
    $region8: #{tpu_custom_call.1} parent=1 // pred_region
      %s30 = ssub.s32 256, 256
      %31 = vsyncadd [#allocation7], %s30
      %s32 = sshll.u32 [#allocation6], 4
      %s33 = int_to_ptr.vmem [resolvable:$true] %s32
      %38 = dma.hbm_to_vmem [thread:$0]  %s1, 256, %s33, [#allocation7], 128, 128, 8
    $region9: #{tpu_custom_call.1} parent=1 // pred_fallthru
      _
    // Predicated region
    $region10: #{tpu_custom_call.1} parent=1 // pred_check
      _
    $region11: #{tpu_custom_call.1} parent=1 // pred_check_branch
      %40 = sbr.rel (0) target = $region13
    $region12: #{tpu_custom_call.1} parent=1 // pred_region
      _
    $region13: #{tpu_custom_call.1} parent=1 // pred_fallthru
      _
    // Predicated region
    $region14: #{tpu_custom_call.1} parent=1 // pred_check
      _
    $region15: #{tpu_custom_call.1} parent=1 // pred_check_branch
      %42 = sbr.rel (0) target = $region17
    $region16: #{tpu_custom_call.1} parent=1 // pred_region
      %s44 = ssub.s32 512, 512
      %45 = vsyncadd [#allocation7], %s44
      %s46 = sshll.u32 [#allocation8], 4
      %s47 = int_to_ptr.vmem [resolvable:$true] %s46
      %52 = dma.hbm_to_vmem [thread:$0]  %s3, 512, %s47, [#allocation7], 128, 128, 8
    $region17: #{tpu_custom_call.1} parent=1 // pred_fallthru
      _
    // Predicated region
    $region18: #{tpu_custom_call.1} parent=1 // pred_check
      _
    $region19: #{tpu_custom_call.1} parent=1 // pred_check_branch
      %54 = sbr.rel (0) target = $region21
    $region20: #{tpu_custom_call.1} parent=1 // pred_region
      _
    $region21: #{tpu_custom_call.1} parent=1 // pred_fallthru
      _
    // Predicated region
    $region22: #{tpu_custom_call.1} parent=1 // pred_check
      _
    $region23: #{tpu_custom_call.1} parent=1 // pred_check_branch
      %56 = sbr.rel (0) target = $region25
    $region24: #{tpu_custom_call.1} parent=1 // pred_region
      _
    $region25: #{tpu_custom_call.1} parent=1 // pred_fallthru
      _
    // Predicated region
    $region26: #{tpu_custom_call.1} parent=1 // pred_check
      _
    $region27: #{tpu_custom_call.1} parent=1 // pred_check_branch
      %58 = sbr.rel (0) target = $region29
    $region28: #{tpu_custom_call.1} parent=1 // pred_region
      _
    $region29: #{tpu_custom_call.1} parent=1 // pred_fallthru
      _
    // Predicated region
    $region30: #{tpu_custom_call.1} parent=1 // pred_check
      _
    $region31: #{tpu_custom_call.1} parent=1 // pred_check_branch
      %60 = sbr.rel (0) target = $region33
    $region32: #{tpu_custom_call.1} parent=1 // pred_region
      %61 = dma.done [#allocation4], 128
    $region33: #{tpu_custom_call.1} parent=1 // pred_fallthru
      _
    // Predicated region
    $region34: #{tpu_custom_call.1} parent=1 // pred_check
      _
    $region35: #{tpu_custom_call.1} parent=1 // pred_check_branch
      %63 = sbr.rel (0) target = $region37
    $region36: #{tpu_custom_call.1} parent=1 // pred_region
      %64 = dma.done [#allocation7], 256
    $region37: #{tpu_custom_call.1} parent=1 // pred_fallthru
      _
    // Predicated region
    $region38: #{tpu_custom_call.1} parent=1 // pred_check
      _
    $region39: #{tpu_custom_call.1} parent=1 // pred_check_branch
      %66 = sbr.rel (0) target = $region41
    $region40: #{tpu_custom_call.1} parent=1 // pred_region
      %67 = dma.done [#allocation7], 512
    $region41: #{tpu_custom_call.1} parent=1 // pred_fallthru
      _
    %v68 = vld [vmem:[#allocation3] sm:$0xff]
    %v69 = vld [vmem:[#allocation6] sm:$0xff]
    %v70 = vld [vmem:[#allocation6 + $0x8] sm:$0xff]
    %v71 = vld [vmem:[%s2] sm:$0x1]
    %v73 = vlaneseq
    %v74 = vshrl.u32 %v73, 7
    %v75 = vsub.s32 0, %v74
    %v76 = vrot.slane %v71, %v75
    %vm78 = vcmask 130048
    %v80 = vsel %vm78, %v68, 0
    %82 = vmatprep.subr.mxu0 0.0
    %83 = vmatpush1.msra.mxu0 0.0
    %84 = vmatprep.subr.mxu0 0.0
    %85 = vmatpush1.msra.mxu0 0.0
    %86 = vmatprep.subr.mxu0 0.0
    %87 = vmatpush1.msra.mxu0 0.0
    %88 = vmatprep.subr.mxu0 0.0
    %89 = vmatpush1.msra.mxu0 0.0
    %90 = vmatprep.subr.mxu0 0.0
    %91 = vmatpush1.msra.mxu0 0.0
    %92 = vmatprep.subr.mxu0 0.0
    %93 = vmatpush1.msra.mxu0 0.0
    %94 = vmatprep.subr.mxu0 0.0
    %95 = vmatpush1.msra.mxu0 0.0
    %96 = vmatprep.subr.mxu0 0.0
    %97 = vmatpush1.msra.mxu0 0.0
    %98 = vmatprep.subr.mxu0 0.0
    %99 = vmatpush1.msra.mxu0 0.0
    %100 = vmatprep.subr.mxu0 0.0
    %101 = vmatpush1.msra.mxu0 0.0
    %102 = vmatprep.subr.mxu0 0.0
    %103 = vmatpush1.msra.mxu0 0.0
    %104 = vmatprep.subr.mxu0 0.0
    %105 = vmatpush1.msra.mxu0 0.0
    %106 = vmatprep.subr.mxu0 0.0
    %107 = vmatpush1.msra.mxu0 0.0
    %108 = vmatprep.subr.mxu0 0.0
    %109 = vmatpush1.msra.mxu0 0.0
    %110 = vmatprep.subr.mxu0 0.0
    %111 = vmatpush1.msra.mxu0 %v70
    %112 = vmatprep.subr.mxu0 0.0
    %113 = vmatpush1.msra.mxu0 %v69
    %114 = vmatprep.subr.mxu0 0.0
    %115 = vmatpush2.msra.mxu0 0.0
    %116 = vmatprep.subr.mxu0 0.0
    %117 = vmatpush2.msra.mxu0 0.0
    %118 = vmatprep.subr.mxu0 0.0
    %119 = vmatpush2.msra.mxu0 0.0
    %120 = vmatprep.subr.mxu0 0.0
    %121 = vmatpush2.msra.mxu0 0.0
    %122 = vmatprep.subr.mxu0 0.0
    %123 = vmatpush2.msra.mxu0 0.0
    %124 = vmatprep.subr.mxu0 0.0
    %125 = vmatpush2.msra.mxu0 0.0
    %126 = vmatprep.subr.mxu0 0.0
    %127 = vmatpush2.msra.mxu0 0.0
    %128 = vmatprep.subr.mxu0 0.0
    %129 = vmatpush2.msra.mxu0 0.0
    %130 = vmatprep.subr.mxu0 0.0
    %131 = vmatpush2.msra.mxu0 0.0
    %132 = vmatprep.subr.mxu0 0.0
    %133 = vmatpush2.msra.mxu0 0.0
    %134 = vmatprep.subr.mxu0 0.0
    %135 = vmatpush2.msra.mxu0 0.0
    %136 = vmatprep.subr.mxu0 0.0
    %137 = vmatpush2.msra.mxu0 0.0
    %138 = vmatprep.subr.mxu0 0.0
    %139 = vmatpush2.msra.mxu0 0.0
    %140 = vmatprep.subr.mxu0 0.0
    %141 = vmatpush2.msra.mxu0 0.0
    %142 = vmatprep.subr.mxu0 0.0
    %143 = vmatpush2.msra.mxu0 0.0
    %144 = vmatprep.subr.mxu0 0.0
    %145 = vmatpush2.msra.mxu0 0.0
    %146 = vmatprep.mubr.f32.mxu0 0.0
    %147 = vmatmul.mubr.f32.gmra.mxu0 %v80
    %v148 = vpop.f32.mrf.mxu0
    %v149 = vadd.f32 %v76, %v148
    %v150 = vpop.f32.mrf.mxu0
    %151 = vdwg.mxu0
    %v152 = vtanh.pop %v149
    %v153 = vld [vmem:[#allocation8] sm:$0xff]
    %v154 = vld [vmem:[#allocation8 + $0x8] sm:$0xff]
    %v155 = vld [vmem:[#allocation8 + $0x10] sm:$0xff]
    %v156 = vld [vmem:[#allocation8 + $0x18] sm:$0xff]
    %v157 = vld [vmem:[%s4] sm:$0x1]
    %v159 = vlaneseq
    %v160 = vshrl.u32 %v159, 7
    %v161 = vsub.s32 0, %v160
    %v162 = vrot.slane %v157, %v161
    %vm164 = vcmask 261120
    %v166 = vsel %vm164, %v152, 0
    %168 = vmatprep.subr.mxu0 0.0
    %169 = vmatpush1.msra.mxu0 0.0
    %170 = vmatprep.subr.mxu0 0.0
    %171 = vmatpush1.msra.mxu0 0.0
    %172 = vmatprep.subr.mxu0 0.0
    %173 = vmatpush1.msra.mxu0 0.0
    %174 = vmatprep.subr.mxu0 0.0
    %175 = vmatpush1.msra.mxu0 0.0
    %176 = vmatprep.subr.mxu0 0.0
    %177 = vmatpush1.msra.mxu0 0.0
    %178 = vmatprep.subr.mxu0 0.0
    %179 = vmatpush1.msra.mxu0 0.0
    %180 = vmatprep.subr.mxu0 0.0
    %181 = vmatpush1.msra.mxu0 0.0
    %182 = vmatprep.subr.mxu0 0.0
    %183 = vmatpush1.msra.mxu0 0.0
    %184 = vmatprep.subr.mxu0 0.0
    %185 = vmatpush1.msra.mxu0 0.0
    %186 = vmatprep.subr.mxu0 0.0
    %187 = vmatpush1.msra.mxu0 0.0
    %188 = vmatprep.subr.mxu0 0.0
    %189 = vmatpush1.msra.mxu0 0.0
    %190 = vmatprep.subr.mxu0 0.0
    %191 = vmatpush1.msra.mxu0 0.0
    %192 = vmatprep.subr.mxu0 0.0
    %193 = vmatpush1.msra.mxu0 %v156
    %194 = vmatprep.subr.mxu0 0.0
    %195 = vmatpush1.msra.mxu0 %v155
    %196 = vmatprep.subr.mxu0 0.0
    %197 = vmatpush1.msra.mxu0 %v154
    %198 = vmatprep.subr.mxu0 0.0
    %199 = vmatpush1.msra.mxu0 %v153
    %200 = vmatprep.subr.mxu0 0.0
    %201 = vmatpush2.msra.mxu0 0.0
    %202 = vmatprep.subr.mxu0 0.0
    %203 = vmatpush2.msra.mxu0 0.0
    %204 = vmatprep.subr.mxu0 0.0
    %205 = vmatpush2.msra.mxu0 0.0
    %206 = vmatprep.subr.mxu0 0.0
    %207 = vmatpush2.msra.mxu0 0.0
    %208 = vmatprep.subr.mxu0 0.0
    %209 = vmatpush2.msra.mxu0 0.0
    %210 = vmatprep.subr.mxu0 0.0
    %211 = vmatpush2.msra.mxu0 0.0
    %212 = vmatprep.subr.mxu0 0.0
    %213 = vmatpush2.msra.mxu0 0.0
    %214 = vmatprep.subr.mxu0 0.0
    %215 = vmatpush2.msra.mxu0 0.0
    %216 = vmatprep.subr.mxu0 0.0
    %217 = vmatpush2.msra.mxu0 0.0
    %218 = vmatprep.subr.mxu0 0.0
    %219 = vmatpush2.msra.mxu0 0.0
    %220 = vmatprep.subr.mxu0 0.0
    %221 = vmatpush2.msra.mxu0 0.0
    %222 = vmatprep.subr.mxu0 0.0
    %223 = vmatpush2.msra.mxu0 0.0
    %224 = vmatprep.subr.mxu0 0.0
    %225 = vmatpush2.msra.mxu0 0.0
    %226 = vmatprep.subr.mxu0 0.0
    %227 = vmatpush2.msra.mxu0 0.0
    %228 = vmatprep.subr.mxu0 0.0
    %229 = vmatpush2.msra.mxu0 0.0
    %230 = vmatprep.subr.mxu0 0.0
    %231 = vmatpush2.msra.mxu0 0.0
    %232 = vmatprep.mubr.f32.mxu0 0.0
    %233 = vmatmul.mubr.f32.gmra.mxu0 %v166
    %v234 = vpop.f32.mrf.mxu0
    %v235 = vadd.f32 %v162, %v234
    %v236 = vpop.f32.mrf.mxu0
    %237 = vdwg.mxu0
    %v238 = vtanh.pop %v235
    %v239 = vld [vmem:[%s5] sm:$0x1]
    %v240 = vld [vmem:[#allocation2] sm:$0x1]
    %242 = vset.pattern.permute.xlu0 0
    %243 = vperm.xlu0 %242, %v240
    %v244 = vpop.permute.xlu0 %243
    %v246 = vlaneseq
    %v247 = vshrl.u32 %v246, 7
    %v248 = vsub.s32 0, %v247
    %v249 = vrot.slane %v244, %v248
    %v251 = vsel %vm164, %v239, 0
    %v254 = vsel %vm164, %v238, 0
    %256 = vmatprep.subr.mxu0 0.0
    %257 = vmatpush1.xpose.msra.mxu0 0.0
    %258 = vmatprep.subr.mxu0 0.0
    %259 = vmatpush1.xpose.msra.mxu0 0.0
    %260 = vmatprep.subr.mxu0 0.0
    %261 = vmatpush1.xpose.msra.mxu0 0.0
    %262 = vmatprep.subr.mxu0 0.0
    %263 = vmatpush1.xpose.msra.mxu0 0.0
    %264 = vmatprep.subr.mxu0 0.0
    %265 = vmatpush1.xpose.msra.mxu0 0.0
    %266 = vmatprep.subr.mxu0 0.0
    %267 = vmatpush1.xpose.msra.mxu0 0.0
    %268 = vmatprep.subr.mxu0 0.0
    %269 = vmatpush1.xpose.msra.mxu0 0.0
    %270 = vmatprep.subr.mxu0 0.0
    %271 = vmatpush1.xpose.msra.mxu0 0.0
    %272 = vmatprep.subr.mxu0 0.0
    %273 = vmatpush1.xpose.msra.mxu0 0.0
    %274 = vmatprep.subr.mxu0 0.0
    %275 = vmatpush1.xpose.msra.mxu0 0.0
    %276 = vmatprep.subr.mxu0 0.0
    %277 = vmatpush1.xpose.msra.mxu0 0.0
    %278 = vmatprep.subr.mxu0 0.0
    %279 = vmatpush1.xpose.msra.mxu0 0.0
    %280 = vmatprep.subr.mxu0 0.0
    %281 = vmatpush1.xpose.msra.mxu0 0.0
    %282 = vmatprep.subr.mxu0 0.0
    %283 = vmatpush1.xpose.msra.mxu0 0.0
    %284 = vmatprep.subr.mxu0 0.0
    %285 = vmatpush1.xpose.msra.mxu0 0.0
    %286 = vmatprep.subr.mxu0 0.0
    %287 = vmatpush1.xpose.msra.mxu0 %v254
    %288 = vmatprep.subr.mxu0 0.0
    %289 = vmatpush2.xpose.msra.mxu0 0.0
    %290 = vmatprep.subr.mxu0 0.0
    %291 = vmatpush2.xpose.msra.mxu0 0.0
    %292 = vmatprep.subr.mxu0 0.0
    %293 = vmatpush2.xpose.msra.mxu0 0.0
    %294 = vmatprep.subr.mxu0 0.0
    %295 = vmatpush2.xpose.msra.mxu0 0.0
    %296 = vmatprep.subr.mxu0 0.0
    %297 = vmatpush2.xpose.msra.mxu0 0.0
    %298 = vmatprep.subr.mxu0 0.0
    %299 = vmatpush2.xpose.msra.mxu0 0.0
    %300 = vmatprep.subr.mxu0 0.0
    %301 = vmatpush2.xpose.msra.mxu0 0.0
    %302 = vmatprep.subr.mxu0 0.0
    %303 = vmatpush2.xpose.msra.mxu0 0.0
    %304 = vmatprep.subr.mxu0 0.0
    %305 = vmatpush2.xpose.msra.mxu0 0.0
    %306 = vmatprep.subr.mxu0 0.0
    %307 = vmatpush2.xpose.msra.mxu0 0.0
    %308 = vmatprep.subr.mxu0 0.0
    %309 = vmatpush2.xpose.msra.mxu0 0.0
    %310 = vmatprep.subr.mxu0 0.0
    %311 = vmatpush2.xpose.msra.mxu0 0.0
    %312 = vmatprep.subr.mxu0 0.0
    %313 = vmatpush2.xpose.msra.mxu0 0.0
    %314 = vmatprep.subr.mxu0 0.0
    %315 = vmatpush2.xpose.msra.mxu0 0.0
    %316 = vmatprep.subr.mxu0 0.0
    %317 = vmatpush2.xpose.msra.mxu0 0.0
    %318 = vmatprep.subr.mxu0 0.0
    %319 = vmatpush2.xpose.msra.mxu0 0.0
    %320 = vmatprep.mubr.f32.mxu0 0.0
    %321 = vmatmul.mubr.f32.gmra.mxu0 %v251
    %v322 = vpop.f32.mrf.mxu0
    %v323 = vadd.f32 %v249, %v322
    %v324 = vpop.f32.mrf.mxu0
    %325 = vdwg.mxu0
    %vm326 = vcmask 57344
    %327 = vst.msk [vmem:[#allocation9] sm:$0x1] %vm326, %v323
    // Predicated region
    $region42: #{tpu_custom_call.1} parent=1 // pred_check
      _
    $region43: #{tpu_custom_call.1} parent=1 // pred_check_branch
      %329 = sbr.rel (0) target = $region45
    $region44: #{tpu_custom_call.1} parent=1 // pred_region
      %s331 = ssub.s32 16, 16
      %332 = vsyncadd [#allocation5], %s331
      %s334 = sshll.u32 [#allocation9], 4
      %s335 = int_to_ptr.vmem [resolvable:$true] %s334
      %337 = dma.vmem_to_hbm [thread:$0]  %s335, 16, %s7, [#allocation5]
    $region45: #{tpu_custom_call.1} parent=1 // pred_fallthru
      _
    // Predicated region
    $region46: #{tpu_custom_call.1} parent=1 // pred_check
      _
    $region47: #{tpu_custom_call.1} parent=1 // pred_check_branch
      %339 = sbr.rel (0) target = $region49
    $region48: #{tpu_custom_call.1} parent=1 // pred_region
      %340 = dma.done [#allocation5], 16
    $region49: #{tpu_custom_call.1} parent=1 // pred_fallthru
      _
    %341 = vsyncpa [#allocation4], 1
    %342 = vsyncpa [#allocation7], 1
    %343 = vsyncpa [#allocation5], 1

</llo_original>
